<compile_context>
chip_gen: v6e
topology: v6e:2x2x1
jax: 0.10.0
libtpu: 0.0.40
codegen_flags: <defaults>
</compile_context>

<pallas_src>
import functools

import jax
import jax.numpy as jnp
from jax.experimental import pallas as pl
from jax.experimental.pallas import tpu as pltpu

CLAMP = 4.6051
INIT_TAU = 0.07
NORM_EPS = 1e-12

_POW2_BLOCKS = (512, 256, 128, 64, 32, 16, 8)


# ----------------------------- kernel ---------------------------------------


def _ntxent_kernel(tau_ref, v_row_ref, t_row_ref, v_col_ref, t_col_ref,
                   out_ref, m_v, l_v, m_t, l_t, *, n_valid, masked):
    i = pl.program_id(0)
    j = pl.program_id(1)
    nj = pl.num_programs(1)

    scale = jnp.exp(jnp.clip(tau_ref[0], 0.0, CLAMP))

    @pl.when(j == 0)
    def _init():
        m_v[...] = jnp.full(m_v.shape, -jnp.inf, dtype=jnp.float32)
        l_v[...] = jnp.zeros(l_v.shape, dtype=jnp.float32)
        m_t[...] = jnp.full(m_t.shape, -jnp.inf, dtype=jnp.float32)
        l_t[...] = jnp.zeros(l_t.shape, dtype=jnp.float32)

    # bf16 operands, f32 accumulation; contract feature dims directly (A @ B.T, no transpose).
    dn = (((1,), (1,)), ((), ()))
    logits_v = jax.lax.dot_general(v_row_ref[...], t_col_ref[...], dn,
                                   preferred_element_type=jnp.float32) * scale
    logits_t = jax.lax.dot_general(t_row_ref[...], v_col_ref[...], dn,
                                   preferred_element_type=jnp.float32) * scale

    if masked:
        br, bc = logits_v.shape
        col = jax.lax.broadcasted_iota(jnp.int32, (br, bc), 1) + j * bc
        key_ok = col < n_valid
        neg = jnp.float32(-1e30)
        logits_v = jnp.where(key_ok, logits_v, neg)
        logits_t = jnp.where(key_ok, logits_t, neg)

    def online_lse(logits, m_ref, l_ref):
        m_new = jnp.maximum(m_ref[...], jnp.max(logits, axis=1, keepdims=True))
        alpha = jnp.exp(m_ref[...] - m_new)
        # TODO(synk): once the matmul is bf16, the two big exps may bind on the single EUP on
        # v6e/v7x; a bf16 exp with f32 row-sum accumulation is a possible follow-up (verify with
        # a bundle dump before committing).
        l_ref[...] = alpha * l_ref[...] + jnp.sum(jnp.exp(logits - m_new),
                                                  axis=1, keepdims=True)
        m_ref[...] = m_new

    online_lse(logits_v, m_v, l_v)   # rows of logits     -> loss_v
    online_lse(logits_t, m_t, l_t)   # rows of logits.T   -> loss_t

    @pl.when(j == nj - 1)
    def _finalize():
        lse_v = m_v[...] + jnp.log(l_v[...])                       # (TBr, 1)
        lse_t = m_t[...] + jnp.log(l_t[...])                       # (TBr, 1)
        # correct-class (diagonal) logits for this row block: scale * <v_r, t_r>; no BxB masks.
        vr = v_row_ref[...].astype(jnp.float32)
        tr = t_row_ref[...].astype(jnp.float32)
        diag = scale * jnp.sum(vr * tr, axis=1, keepdims=True)
        per_row = lse_v + lse_t - 2.0 * diag
        if masked:
            br = per_row.shape[0]
            row = jax.lax.broadcasted_iota(jnp.int32, (br, 1), 0) + i * br
            per_row = jnp.where(row < n_valid, per_row, 0.0)
        partial = jnp.sum(per_row)
        out_ref[...] = jnp.broadcast_to(partial, out_ref.shape).astype(jnp.float32)


# ------------------------- planning / wrapper --------------------------------


@functools.lru_cache(maxsize=None)
def _vmem_capacity_bytes():
    try:
        cap = int(pltpu.get_tpu_info().vmem_capacity_bytes)
        if cap > 0:
            return cap
    except Exception:
        pass
    try:
        kind = jax.devices()[0].device_kind.lower()
        if "v5" in kind or "v6" in kind:
            return 128 * 1024 * 1024
    except Exception:
        pass
    return 64 * 1024 * 1024          # conservative (v7x per-TensorCore)


@functools.lru_cache(maxsize=None)
def _vmem_limit_bytes():
    cap = _vmem_capacity_bytes()
    limit = min(int(cap * 0.78), 100 * 1024 * 1024)   # ~100 MiB on v5e/v6e, ~50 MiB on v7x
    try:
        if "v7" in jax.devices()[0].device_kind.lower():
            limit = min(limit, 50 * 1024 * 1024)
    except Exception:
        pass
    return max(limit, 24 * 1024 * 1024)


def _round_up(x, m):
    return ((x + m - 1) // m) * m


def _working_set_bytes(br, bc, D):
    tiles = 2 * 2 * (br + bc) * D * 2        # v/t row + col bf16 tiles, double-buffered
    temps = 6 * br * bc * 4                  # two f32 logits tiles + exp / mask temporaries
    scratch = 4 * br * 4 + 2 * 8 * 128 * 4   # m/l scratch + output tile
    return tiles + temps + scratch


def _choose_blocks(B, D, budget):
    B8 = _round_up(B, 8)
    # 1) whole (padded) key set VMEM-resident -> single column block, no key re-streaming.
    for br in _POW2_BLOCKS:
        if br > B8:
            continue
        bc = _round_up(B, br)
        if _working_set_bytes(br, bc, D) <= budget:
            return br, bc
    # 2) tiled keys: both sizes are pow2 multiples of 8 with bc >= br, so br | bc | B_pad.
    for bc in (2048, 1024) + _POW2_BLOCKS:
        if bc > B8:
            continue
        for br in _POW2_BLOCKS:
            if br > bc:
                continue
            if _working_set_bytes(br, bc, D) <= budget:
                return br, bc
    return 8, 8


def _plan_blocks(B, D, block_rows, block_cols):
    if block_rows is None or block_cols is None:
        budget = int(_vmem_limit_bytes() * 0.8)
        block_rows, block_cols = _choose_blocks(B, D, budget)
    else:
        assert block_rows % 8 == 0 and block_cols % block_rows == 0, (block_rows, block_cols)
    B_pad = _round_up(B, block_cols)
    # v7x megacore: keep the "parallel" row axis at >= 2 blocks whenever possible.
    while B_pad // block_rows < 2 and block_rows > 8 and (block_rows // 2) % 8 == 0:
        block_rows //= 2
    return block_rows, block_cols, B_pad


def _normalize_bf16(x):
    # F.normalize(dim=1): x / max(||x||, eps)  ==  x * rsqrt(max(||x||^2, eps^2))
    x = x.astype(jnp.float32)
    inv = jax.lax.rsqrt(
        jnp.maximum(jnp.sum(x * x, axis=1, keepdims=True), NORM_EPS * NORM_EPS))
    return (x * inv).astype(jnp.bfloat16)


@functools.partial(jax.jit, static_argnames=("block_rows", "block_cols"))
def learnable_ntxent_loss(v_emb, t_emb, tau, *, block_rows=None, block_cols=None):
    """v_emb, t_emb: [B, D]; tau: [1] f32 learnable log-inverse-temperature."""
    # TODO(synk): the module's `logits is not None` branch (precomputed logits) is not
    # implemented here; only the v_emb / t_emb contrastive path is kernelized.
    B, D = v_emb.shape
    assert t_emb.shape == (B, D)

    block_rows, block_cols, B_pad = _plan_blocks(B, D, block_rows, block_cols)
    num_row_blocks = B_pad // block_rows
    num_col_blocks = B_pad // block_cols
    masked = B_pad > B

    # Pre-normalize ONCE (fused XLA prologue) into unit-norm bf16 copies; pad with zero rows.
    v_n = _normalize_bf16(v_emb)
    t_n = _normalize_bf16(t_emb)
    if masked:
        pad = ((0, B_pad - B), (0, 0))
        v_n = jnp.pad(v_n, pad)
        t_n = jnp.pad(t_n, pad)

    row_spec = pl.BlockSpec((block_rows, D), lambda i, j: (i, 0))
    col_spec = pl.BlockSpec((block_cols, D), lambda i, j: (j, 0))

    kernel = functools.partial(_ntxent_kernel, n_valid=B, masked=masked)

    partials = pl.pallas_call(
        kernel,
        out_shape=jax.ShapeDtypeStruct((num_row_blocks, 8, 128), jnp.float32),
        grid_spec=pltpu.PrefetchScalarGridSpec(
            num_scalar_prefetch=0,
            grid=(num_row_blocks, num_col_blocks),
            in_specs=[
                pl.BlockSpec(memory_space=pltpu.MemorySpace.SMEM),  # tau (scalar parameter)
                row_spec,                                           # v rows   (block i)
                row_spec,                                           # t rows   (block i)
                col_spec,                                           # v cols   (block j)
                col_spec,                                           # t cols   (block j)
            ],
            out_specs=pl.BlockSpec((1, 8, 128), lambda i, j: (i, 0, 0)),
            scratch_shapes=[pltpu.VMEM((block_rows, 1), jnp.float32)] * 4,
        ),
        compiler_params=pltpu.CompilerParams(
            dimension_semantics=("parallel", "arbitrary"),
            vmem_limit_bytes=_vmem_limit_bytes(),
        ),
    )(tau, v_n, t_n, v_n, t_n)

    # Tiny final reduction over the per-row-block partials in plain JAX.
    return 0.5 * jnp.sum(partials[:, 0, 0]) / B


# ------------------------------ reference ------------------------------------


def _reference(v_emb, t_emb, tau, *, bf16_matmul=False):
    """Pure-JAX reference mirroring the PyTorch module."""
    tau_c = jnp.clip(tau[0], 0.0, CLAMP)
    if bf16_matmul:
        v = _normalize_bf16(v_emb)
        t = _normalize_bf16(t_emb)
    else:
        v = v_emb / jnp.maximum(jnp.linalg.norm(v_emb, axis=1, keepdims=True), NORM_EPS)
        t = t_emb / jnp.maximum(jnp.linalg.norm(t_emb, axis=1, keepdims=True), NORM_EPS)
    logits = jnp.dot(v, t.T, preferred_element_type=jnp.float32) * jnp.exp(tau_c)
    labels = jnp.arange(logits.shape[0])

    def ce(lg):
        return jnp.mean(jax.nn.logsumexp(lg, axis=1) - lg[labels, labels])

    return 0.5 * (ce(logits) + ce(logits.T))


if __name__ == "__main__":
    # deterministic parameter init exactly as the module's __init__: tau = log(1 / init_tau)
    tau = jnp.array([jnp.log(1.0 / INIT_TAU)], dtype=jnp.float32)

    def run_case(B, D, seed, **blocks):
        k_v, k_t = jax.random.split(jax.random.fold_in(jax.random.PRNGKey(0), seed))
        v_emb = jax.random.normal(k_v, (B, D), dtype=jnp.float32)
        t_emb = jax.random.normal(k_t, (B, D), dtype=jnp.float32)
        loss = jax.block_until_ready(learnable_ntxent_loss(v_emb, t_emb, tau, **blocks))
        ref_b = jax.block_until_ready(_reference(v_emb, t_emb, tau, bf16_matmul=True))
        ref_f = jax.block_until_ready(_reference(v_emb, t_emb, tau, bf16_matmul=False))
        assert jnp.isfinite(loss), (B, D, loss)
        # tight check vs a reference with identical (bf16-operand) matmul precision
        assert jnp.allclose(loss, ref_b, atol=3e-4, rtol=3e-4), (B, D, float(loss), float(ref_b))
        # loose check vs the exact f32 reference (kernel uses bf16 MXU operands)
        assert jnp.allclose(loss, ref_f, atol=5e-2, rtol=5e-2), (B, D, float(loss), float(ref_f))

    # 4x4 grid: exercises the multi-column-block online-LSE path (no padding / masking).
    run_case(32, 128, seed=0, block_rows=8, block_cols=8)
    # B not a multiple of 8: exercises zero-row padding + column/row masking across 2 col blocks.
    run_case(27, 128, seed=1, block_rows=8, block_cols=16)
    # Automatic, generation-aware block selection (keys fully VMEM-resident).
    run_case(64, 256, seed=2)

    print("KERNEL_OK")
</pallas_src>

<mosaic_0001>
module attributes {stable_mosaic.version = 11 : i64} {
  func.func @_ntxent_kernel(%arg0: i32, %arg1: i32, %arg2: memref<1xf32, #tpu.memory_space<smem>>, %arg3: memref<8x128xbf16, #tpu.memory_space<vmem>>, %arg4: memref<8x128xbf16, #tpu.memory_space<vmem>>, %arg5: memref<8x128xbf16, #tpu.memory_space<vmem>>, %arg6: memref<8x128xbf16, #tpu.memory_space<vmem>>, %arg7: memref<1x8x128xf32, #tpu.memory_space<vmem>>, %arg8: memref<8x1xf32, #tpu.memory_space<vmem>>, %arg9: memref<8x1xf32, #tpu.memory_space<vmem>>, %arg10: memref<8x1xf32, #tpu.memory_space<vmem>>, %arg11: memref<8x1xf32, #tpu.memory_space<vmem>>) attributes {dimension_semantics = [#tpu.dimension_semantics<parallel>, #tpu.dimension_semantics<arbitrary>], iteration_bounds = array<i64: 4, 4>, scalar_prefetch = 0 : i64, scratch_operands = 4 : i64, tpu.core_type = #tpu.core_type<tc>, window_params = [{transform_indices = @transform_0, window_bounds = array<i64: 1>}, {transform_indices = @transform_1, window_bounds = array<i64: 8, 128>}, {transform_indices = @transform_2, window_bounds = array<i64: 8, 128>}, {transform_indices = @transform_3, window_bounds = array<i64: 8, 128>}, {transform_indices = @transform_4, window_bounds = array<i64: 8, 128>}, {transform_indices = @transform_5, window_bounds = array<i64: 1, 8, 128>}]} {
    %c0 = arith.constant 0 : index
    %0 = memref.load %arg2[%c0] : memref<1xf32, #tpu.memory_space<smem>>
    %cst = arith.constant 0.000000e+00 : f32
    %cst_0 = arith.constant 4.605100e+00 : f32
    %1 = arith.maximumf %cst, %0 : f32
    %2 = arith.minimumf %cst_0, %1 : f32
    %3 = math.exp %2 : f32
    %c0_i32 = arith.constant 0 : i32
    %4 = arith.cmpi eq, %arg1, %c0_i32 : i32
    %5 = arith.extui %4 : i1 to i32
    %c0_i32_1 = arith.constant 0 : i32
    %6 = arith.cmpi ne, %5, %c0_i32_1 : i32
    scf.if %6 {
      %cst_37 = arith.constant 0xFF800000 : f32
      %54 = vector.broadcast %cst_37 : f32 to vector<8x1xf32>
      %c0_38 = arith.constant 0 : index
      %c0_39 = arith.constant 0 : index
      %55 = vector.load %arg8[%c0_38, %c0_39] : memref<8x1xf32, #tpu.memory_space<vmem>>, vector<8x1xf32>
      tpu.vector_store %arg8[%c0_38, %c0_39], %54 {strides = array<i32>} : memref<8x1xf32, #tpu.memory_space<vmem>>, vector<8x1xf32>,
      %cst_40 = arith.constant 0.000000e+00 : f32
      %56 = vector.broadcast %cst_40 : f32 to vector<8x1xf32>
      %c0_41 = arith.constant 0 : index
      %c0_42 = arith.constant 0 : index
      %57 = vector.load %arg9[%c0_41, %c0_42] : memref<8x1xf32, #tpu.memory_space<vmem>>, vector<8x1xf32>
      tpu.vector_store %arg9[%c0_41, %c0_42], %56 {strides = array<i32>} : memref<8x1xf32, #tpu.memory_space<vmem>>, vector<8x1xf32>,
      %cst_43 = arith.constant 0xFF800000 : f32
      %58 = vector.broadcast %cst_43 : f32 to vector<8x1xf32>
      %c0_44 = arith.constant 0 : index
      %c0_45 = arith.constant 0 : index
      %59 = vector.load %arg10[%c0_44, %c0_45] : memref<8x1xf32, #tpu.memory_space<vmem>>, vector<8x1xf32>
      tpu.vector_store %arg10[%c0_44, %c0_45], %58 {strides = array<i32>} : memref<8x1xf32, #tpu.memory_space<vmem>>, vector<8x1xf32>,
      %cst_46 = arith.constant 0.000000e+00 : f32
      %60 = vector.broadcast %cst_46 : f32 to vector<8x1xf32>
      %c0_47 = arith.constant 0 : index
      %c0_48 = arith.constant 0 : index
      %61 = vector.load %arg11[%c0_47, %c0_48] : memref<8x1xf32, #tpu.memory_space<vmem>>, vector<8x1xf32>
      tpu.vector_store %arg11[%c0_47, %c0_48], %60 {strides = array<i32>} : memref<8x1xf32, #tpu.memory_space<vmem>>, vector<8x1xf32>,
    } else {
    }
    %c0_2 = arith.constant 0 : index
    %c0_3 = arith.constant 0 : index
    %7 = vector.load %arg3[%c0_2, %c0_3] : memref<8x128xbf16, #tpu.memory_space<vmem>>, vector<8x128xbf16>
    %c0_4 = arith.constant 0 : index
    %c0_5 = arith.constant 0 : index
    %8 = vector.load %arg6[%c0_4, %c0_5] : memref<8x128xbf16, #tpu.memory_space<vmem>>, vector<8x128xbf16>
    %cst_6 = arith.constant dense<0.000000e+00> : vector<8x8xf32>
    %9 = tpu.matmul %7, %8, %cst_6 {dimension_numbers = #tpu.dot_dimension_numbers<[1], [1], [0], [0], [0, 0, 1, 0], [], []>} : vector<8x128xbf16>, vector<8x128xbf16>, vector<8x8xf32> -> vector<8x8xf32>
    %10 = vector.broadcast %3 : f32 to vector<8x8xf32>
    %11 = arith.mulf %9, %10 : vector<8x8xf32>
    %c0_7 = arith.constant 0 : index
    %c0_8 = arith.constant 0 : index
    %12 = vector.load %arg4[%c0_7, %c0_8] : memref<8x128xbf16, #tpu.memory_space<vmem>>, vector<8x128xbf16>
    %c0_9 = arith.constant 0 : index
    %c0_10 = arith.constant 0 : index
    %13 = vector.load %arg5[%c0_9, %c0_10] : memref<8x128xbf16, #tpu.memory_space<vmem>>, vector<8x128xbf16>
    %cst_11 = arith.constant dense<0.000000e+00> : vector<8x8xf32>
    %14 = tpu.matmul %12, %13, %cst_11 {dimension_numbers = #tpu.dot_dimension_numbers<[1], [1], [0], [0], [0, 0, 1, 0], [], []>} : vector<8x128xbf16>, vector<8x128xbf16>, vector<8x8xf32> -> vector<8x8xf32>
    %15 = vector.broadcast %3 : f32 to vector<8x8xf32>
    %16 = arith.mulf %14, %15 : vector<8x8xf32>
    %c0_12 = arith.constant 0 : index
    %c0_13 = arith.constant 0 : index
    %17 = vector.load %arg8[%c0_12, %c0_13] : memref<8x1xf32, #tpu.memory_space<vmem>>, vector<8x1xf32>
    %cst_14 = arith.constant dense<0xFF800000> : vector<8xf32>
    %18 = vector.multi_reduction <maximumf>, %11, %cst_14 [1] : vector<8x8xf32> to vector<8xf32>
    %19 = vector.shape_cast %18 : vector<8xf32> to vector<8x1xf32>
    %20 = arith.maximumf %17, %19 : vector<8x1xf32>
    %c0_15 = arith.constant 0 : index
    %c0_16 = arith.constant 0 : index
    %21 = vector.load %arg8[%c0_15, %c0_16] : memref<8x1xf32, #tpu.memory_space<vmem>>, vector<8x1xf32>
    %22 = arith.subf %21, %20 : vector<8x1xf32>
    %23 = math.exp %22 : vector<8x1xf32>
    %c0_17 = arith.constant 0 : index
    %c0_18 = arith.constant 0 : index
    %24 = vector.load %arg9[%c0_17, %c0_18] : memref<8x1xf32, #tpu.memory_space<vmem>>, vector<8x1xf32>
    %25 = arith.mulf %23, %24 : vector<8x1xf32>
    %26 = vector.broadcast %20 : vector<8x1xf32> to vector<8x8xf32>
    %27 = arith.subf %11, %26 : vector<8x8xf32>
    %28 = math.exp %27 : vector<8x8xf32>
    %cst_19 = arith.constant dense<0.000000e+00> : vector<8xf32>
    %29 = vector.multi_reduction <add>, %28, %cst_19 [1] : vector<8x8xf32> to vector<8xf32>
    %30 = vector.shape_cast %29 : vector<8xf32> to vector<8x1xf32>
    %31 = arith.addf %25, %30 : vector<8x1xf32>
    %c0_20 = arith.constant 0 : index
    %c0_21 = arith.constant 0 : index
    %32 = vector.load %arg9[%c0_20, %c0_21] : memref<8x1xf32, #tpu.memory_space<vmem>>, vector<8x1xf32>
    tpu.vector_store %arg9[%c0_20, %c0_21], %31 {strides = array<i32>} : memref<8x1xf32, #tpu.memory_space<vmem>>, vector<8x1xf32>,
    %c0_22 = arith.constant 0 : index
    %c0_23 = arith.constant 0 : index
    %33 = vector.load %arg8[%c0_22, %c0_23] : memref<8x1xf32, #tpu.memory_space<vmem>>, vector<8x1xf32>
    tpu.vector_store %arg8[%c0_22, %c0_23], %20 {strides = array<i32>} : memref<8x1xf32, #tpu.memory_space<vmem>>, vector<8x1xf32>,
    %c0_24 = arith.constant 0 : index
    %c0_25 = arith.constant 0 : index
    %34 = vector.load %arg10[%c0_24, %c0_25] : memref<8x1xf32, #tpu.memory_space<vmem>>, vector<8x1xf32>
    %cst_26 = arith.constant dense<0xFF800000> : vector<8xf32>
    %35 = vector.multi_reduction <maximumf>, %16, %cst_26 [1] : vector<8x8xf32> to vector<8xf32>
    %36 = vector.shape_cast %35 : vector<8xf32> to vector<8x1xf32>
    %37 = arith.maximumf %34, %36 : vector<8x1xf32>
    %c0_27 = arith.constant 0 : index
    %c0_28 = arith.constant 0 : index
    %38 = vector.load %arg10[%c0_27, %c0_28] : memref<8x1xf32, #tpu.memory_space<vmem>>, vector<8x1xf32>
    %39 = arith.subf %38, %37 : vector<8x1xf32>
    %40 = math.exp %39 : vector<8x1xf32>
    %c0_29 = arith.constant 0 : index
    %c0_30 = arith.constant 0 : index
    %41 = vector.load %arg11[%c0_29, %c0_30] : memref<8x1xf32, #tpu.memory_space<vmem>>, vector<8x1xf32>
    %42 = arith.mulf %40, %41 : vector<8x1xf32>
    %43 = vector.broadcast %37 : vector<8x1xf32> to vector<8x8xf32>
    %44 = arith.subf %16, %43 : vector<8x8xf32>
    %45 = math.exp %44 : vector<8x8xf32>
    %cst_31 = arith.constant dense<0.000000e+00> : vector<8xf32>
    %46 = vector.multi_reduction <add>, %45, %cst_31 [1] : vector<8x8xf32> to vector<8xf32>
    %47 = vector.shape_cast %46 : vector<8xf32> to vector<8x1xf32>
    %48 = arith.addf %42, %47 : vector<8x1xf32>
    %c0_32 = arith.constant 0 : index
    %c0_33 = arith.constant 0 : index
    %49 = vector.load %arg11[%c0_32, %c0_33] : memref<8x1xf32, #tpu.memory_space<vmem>>, vector<8x1xf32>
    tpu.vector_store %arg11[%c0_32, %c0_33], %48 {strides = array<i32>} : memref<8x1xf32, #tpu.memory_space<vmem>>, vector<8x1xf32>,
    %c0_34 = arith.constant 0 : index
    %c0_35 = arith.constant 0 : index
    %50 = vector.load %arg10[%c0_34, %c0_35] : memref<8x1xf32, #tpu.memory_space<vmem>>, vector<8x1xf32>
    tpu.vector_store %arg10[%c0_34, %c0_35], %37 {strides = array<i32>} : memref<8x1xf32, #tpu.memory_space<vmem>>, vector<8x1xf32>,
    %c3_i32 = arith.constant 3 : i32
    %51 = arith.cmpi eq, %arg1, %c3_i32 : i32
    %52 = arith.extui %51 : i1 to i32
    %c0_i32_36 = arith.constant 0 : i32
    %53 = arith.cmpi ne, %52, %c0_i32_36 : i32
    scf.if %53 {
      %c0_37 = arith.constant 0 : index
      %c0_38 = arith.constant 0 : index
      %54 = vector.load %arg8[%c0_37, %c0_38] : memref<8x1xf32, #tpu.memory_space<vmem>>, vector<8x1xf32>
      %c0_39 = arith.constant 0 : index
      %c0_40 = arith.constant 0 : index
      %55 = vector.load %arg9[%c0_39, %c0_40] : memref<8x1xf32, #tpu.memory_space<vmem>>, vector<8x1xf32>
      %56 = math.log %55 : vector<8x1xf32>
      %57 = arith.addf %54, %56 : vector<8x1xf32>
      %c0_41 = arith.constant 0 : index
      %c0_42 = arith.constant 0 : index
      %58 = vector.load %arg10[%c0_41, %c0_42] : memref<8x1xf32, #tpu.memory_space<vmem>>, vector<8x1xf32>
      %c0_43 = arith.constant 0 : index
      %c0_44 = arith.constant 0 : index
      %59 = vector.load %arg11[%c0_43, %c0_44] : memref<8x1xf32, #tpu.memory_space<vmem>>, vector<8x1xf32>
      %60 = math.log %59 : vector<8x1xf32>
      %61 = arith.addf %58, %60 : vector<8x1xf32>
      %c0_45 = arith.constant 0 : index
      %c0_46 = arith.constant 0 : index
      %62 = vector.load %arg3[%c0_45, %c0_46] : memref<8x128xbf16, #tpu.memory_space<vmem>>, vector<8x128xbf16>
      %63 = arith.extf %62 : vector<8x128xbf16> to vector<8x128xf32>
      %c0_47 = arith.constant 0 : index
      %c0_48 = arith.constant 0 : index
      %64 = vector.load %arg4[%c0_47, %c0_48] : memref<8x128xbf16, #tpu.memory_space<vmem>>, vector<8x128xbf16>
      %65 = arith.extf %64 : vector<8x128xbf16> to vector<8x128xf32>
      %66 = arith.mulf %63, %65 : vector<8x128xf32>
      %cst_49 = arith.constant dense<0.000000e+00> : vector<8xf32>
      %67 = vector.multi_reduction <add>, %66, %cst_49 [1] : vector<8x128xf32> to vector<8xf32>
      %68 = vector.shape_cast %67 : vector<8xf32> to vector<8x1xf32>
      %69 = vector.broadcast %3 : f32 to vector<8x1xf32>
      %70 = arith.mulf %69, %68 : vector<8x1xf32>
      %71 = arith.addf %57, %61 : vector<8x1xf32>
      %cst_50 = arith.constant 2.000000e+00 : f32
      %72 = vector.broadcast %cst_50 : f32 to vector<8x1xf32>
      %73 = arith.mulf %72, %70 : vector<8x1xf32>
      %74 = arith.subf %71, %73 : vector<8x1xf32>
      %75 = vector.shape_cast %74 : vector<8x1xf32> to vector<1x8x1xf32>
      %cst_51 = arith.constant dense<0.000000e+00> : vector<1xf32>
      %76 = vector.multi_reduction <add>, %75, %cst_51 [1, 2] : vector<1x8x1xf32> to vector<1xf32>
      %77 = vector.shape_cast %76 : vector<1xf32> to vector<1x1x1xf32>
      %78 = vector.extract %77[0, 0, 0] : f32 from vector<1x1x1xf32>
      %79 = vector.broadcast %78 : f32 to vector<1x8x128xf32>
      %c0_52 = arith.constant 0 : index
      %c0_53 = arith.constant 0 : index
      %c0_54 = arith.constant 0 : index
      %80 = vector.load %arg7[%c0_52, %c0_53, %c0_54] : memref<1x8x128xf32, #tpu.memory_space<vmem>>, vector<1x8x128xf32>
      tpu.vector_store %arg7[%c0_52, %c0_53, %c0_54], %79 {strides = array<i32>} : memref<1x8x128xf32, #tpu.memory_space<vmem>>, vector<1x8x128xf32>,
    } else {
    }
    return
  }
  func.func @transform_0(%arg0: i32, %arg1: i32) -> i32 {
    %c0_i32 = arith.constant 0 : i32
    %c0_i32_0 = arith.constant 0 : i32
    return %c0_i32 : i32
  }
  func.func @transform_1(%arg0: i32, %arg1: i32) -> (i32, i32) {
    %c0_i32 = arith.constant 0 : i32
    %c0_i32_0 = arith.constant 0 : i32
    return %arg0, %c0_i32 : i32, i32
  }
  func.func @transform_2(%arg0: i32, %arg1: i32) -> (i32, i32) {
    %c0_i32 = arith.constant 0 : i32
    %c0_i32_0 = arith.constant 0 : i32
    return %arg0, %c0_i32 : i32, i32
  }
  func.func @transform_3(%arg0: i32, %arg1: i32) -> (i32, i32) {
    %c0_i32 = arith.constant 0 : i32
    %c0_i32_0 = arith.constant 0 : i32
    return %arg1, %c0_i32 : i32, i32
  }
  func.func @transform_4(%arg0: i32, %arg1: i32) -> (i32, i32) {
    %c0_i32 = arith.constant 0 : i32
    %c0_i32_0 = arith.constant 0 : i32
    return %arg1, %c0_i32 : i32, i32
  }
  func.func @transform_5(%arg0: i32, %arg1: i32) -> (i32, i32, i32) {
    %c0_i32 = arith.constant 0 : i32
    %c0_i32_0 = arith.constant 0 : i32
    %c0_i32_1 = arith.constant 0 : i32
    return %arg0, %c0_i32, %c0_i32_0 : i32, i32, i32
  }
}

</mosaic_0001>

<llo_original>
// kernel: learnable_ntxent_loss.1
$region0: #{learnable_ntxent_loss.1}
  #allocation0 [shape = 'u32[]', space=smem, size = 0x4, offset = 0x4, fixed_abs, tag = 'smem constant byte address 0x4 - core index']
  #allocation1 [shape = 'u32[144,128]{1,0:T(1,128)}', space=vmem, size = 0x12000, scoped, tag = 'internal scratch']
  #allocation2 [shape = 'f32[8,1]{1,0:T(8,128)}', space=vmem, size = 0x1000, scoped, tag = 'scratch operand']
  #allocation3 [shape = 'f32[8,1]{1,0:T(8,128)}', space=vmem, size = 0x1000, scoped, tag = 'scratch operand']
  #allocation4 [shape = 'f32[8,1]{1,0:T(8,128)}', space=vmem, size = 0x1000, scoped, tag = 'scratch operand']
  #allocation5 [shape = 'f32[8,1]{1,0:T(8,128)}', space=vmem, size = 0x1000, scoped, tag = 'scratch operand']
  #allocation6 [shape = 'f32[1]{0:T(128)S(6)}', space=smem, size = 0x200, scoped, tag = 'scoped memory for learnable_ntxent_loss.1']
  %s0 = inlined_call_operand.<no memory space> [shape: f32[1], index: 0, kind: input, shape index: {}]
  %s1 = inlined_call_operand.vmem [shape: bf16[32,128], index: 1, kind: input, shape index: {}, may-alias: {1,3}]
  %s2 = inlined_call_operand.vmem [shape: bf16[32,128], index: 2, kind: input, shape index: {}, may-alias: {2,4}]
  %s3 = inlined_call_operand.vmem [shape: bf16[32,128], index: 3, kind: input, shape index: {}, may-alias: {1,3}]
  %s4 = inlined_call_operand.vmem [shape: bf16[32,128], index: 4, kind: input, shape index: {}, may-alias: {2,4}]
  %s5 = inlined_call_operand.vmem [shape: f32[4,8,128], index: 5, kind: output, shape index: {}]
  %s6 = sld [smem:[#allocation0]]
  $region61: #{learnable_ntxent_loss.1} parent=0
    _
  %s8 = ssub.s32 1, %s6
  %s9 = scalar_select 0, %s8, %s6
  %10 = sst [smem:[#allocation6]] %s0
  loop: start=0, step=1, limit=18
  $region2: #{learnable_ntxent_loss.1} parent=0 // loop_pre_header
    _
  $region3: #{learnable_ntxent_loss.1} parent=0 // loop_header
    %s12 = sphi 0, %s16
    %p13 = scmp.ge.s32.totalorder %s12, 18
    %s19 = sphi 0, %s31
    %s20 = sphi 0, %s27
    %s21 = sphi 0, %s19
    %s22 = sphi 0, %s20
    %s23 = sphi 0, %s21
    %s24 = sphi 0, %s22
    %s32 = sphi 0, %s32
    %s34 = sphi 0, %s32
    %s35 = sphi 0, %s34
    %s49 = sphi 0, %s35
    %s55 = sphi 0, %s57
    %s58 = sphi 0, %s55
    %s59 = sphi 0, %s58
    %s75 = sphi 0, %s59
    %s81 = sphi 0, %s83
    %s84 = sphi 0, %s81
    %s85 = sphi 0, %s84
    %s101 = sphi 0, %s85
    %s107 = sphi 0, %s109
    %s110 = sphi 0, %s107
    %s111 = sphi 0, %s110
    %s127 = sphi 0, %s111
    %s133 = sphi 0, %s135
    %s136 = sphi 0, %s133
    %s137 = sphi 0, %s136
    %s153 = sphi 0, %s137
    %s159 = sphi 0, %s161
    %s162 = sphi 0, %s159
    %s163 = sphi 0, %s162
    %s179 = sphi 0, %s163
  $region4: #{learnable_ntxent_loss.1} parent=0 // loop_header_branch
    %15 = sbr.rel (%p13) target = $region8
  $region5: #{learnable_ntxent_loss.1} parent=0 // loop_body
    %s17 = ssub.s32 %s12, 1
    %s18 = ssub.s32 %s12, 2
    %s25 = sadd.s32 1, %s20
    %p26 = scmp.ge.s32.totalorder %s25, 4
    %s27 = scalar_select %p26, 0, %s25
    %s28 = sadd.s32 1, %s19
    %s29 = scalar_select %p26, %s28, %s19
    %p30 = scmp.ge.s32.totalorder %s29, 4
    %s31 = scalar_select %p30, 0, %s29
    %s33 = sadd.s32 %s32, 1
    %p36 = scmp.eq.s32.totalorder %s12, 15
    %p37 = scmp.ne.s32.totalorder %s32, %s34
    %p38 = scmp.eq.s32.totalorder %s12, 0
    %p39 = por %p37, %p38
    %p40 = scmp.ne.s32.totalorder %s32, %s34
    %p41 = scmp.eq.s32.totalorder %s17, 15
    %p42 = por %p40, %p41
    %p43 = scmp.ne.s32.totalorder %s34, %s35
    %p44 = scmp.eq.s32.totalorder %s17, 0
    %p45 = por %p43, %p44
    %p46 = scmp.ne.s32.totalorder %s34, %s35
    %p47 = scmp.eq.s32.totalorder %s18, 15
    %p48 = por %p46, %p47
    %p50 = scmp.ne.s32.totalorder %s35, %s49
    %p51 = scmp.eq.s32.totalorder %s18, 0
    %p52 = por %p50, %p51
    %s53 = ssub.s32 %s19, %s31
    %p54 = scmp.eq.s32.totalorder %s53, 0
    %s56 = sadd.s32 %s55, 1
    %s57 = scalar_select %p54, %s55, %s56
    %p60 = pneg %p54
    %p61 = scmp.eq.s32.totalorder %s12, 15
    %p62 = por %p60, %p61
    %p63 = scmp.ne.s32.totalorder %s55, %s58
    %p64 = scmp.eq.s32.totalorder %s12, 0
    %p65 = por %p63, %p64
    %p66 = scmp.ne.s32.totalorder %s55, %s58
    %p67 = scmp.eq.s32.totalorder %s17, 15
    %p68 = por %p66, %p67
    %p69 = scmp.ne.s32.totalorder %s58, %s59
    %p70 = scmp.eq.s32.totalorder %s17, 0
    %p71 = por %p69, %p70
    %p72 = scmp.ne.s32.totalorder %s58, %s59
    %p73 = scmp.eq.s32.totalorder %s18, 15
    %p74 = por %p72, %p73
    %p76 = scmp.ne.s32.totalorder %s59, %s75
    %p77 = scmp.eq.s32.totalorder %s18, 0
    %p78 = por %p76, %p77
    %s79 = ssub.s32 %s19, %s31
    %p80 = scmp.eq.s32.totalorder %s79, 0
    %s82 = sadd.s32 %s81, 1
    %s83 = scalar_select %p80, %s81, %s82
    %p86 = pneg %p80
    %p87 = scmp.eq.s32.totalorder %s12, 15
    %p88 = por %p86, %p87
    %p89 = scmp.ne.s32.totalorder %s81, %s84
    %p90 = scmp.eq.s32.totalorder %s12, 0
    %p91 = por %p89, %p90
    %p92 = scmp.ne.s32.totalorder %s81, %s84
    %p93 = scmp.eq.s32.totalorder %s17, 15
    %p94 = por %p92, %p93
    %p95 = scmp.ne.s32.totalorder %s84, %s85
    %p96 = scmp.eq.s32.totalorder %s17, 0
    %p97 = por %p95, %p96
    %p98 = scmp.ne.s32.totalorder %s84, %s85
    %p99 = scmp.eq.s32.totalorder %s18, 15
    %p100 = por %p98, %p99
    %p102 = scmp.ne.s32.totalorder %s85, %s101
    %p103 = scmp.eq.s32.totalorder %s18, 0
    %p104 = por %p102, %p103
    %s105 = ssub.s32 %s20, %s27
    %p106 = scmp.eq.s32.totalorder %s105, 0
    %s108 = sadd.s32 %s107, 1
    %s109 = scalar_select %p106, %s107, %s108
    %p112 = pneg %p106
    %p113 = scmp.eq.s32.totalorder %s12, 15
    %p114 = por %p112, %p113
    %p115 = scmp.ne.s32.totalorder %s107, %s110
    %p116 = scmp.eq.s32.totalorder %s12, 0
    %p117 = por %p115, %p116
    %p118 = scmp.ne.s32.totalorder %s107, %s110
    %p119 = scmp.eq.s32.totalorder %s17, 15
    %p120 = por %p118, %p119
    %p121 = scmp.ne.s32.totalorder %s110, %s111
    %p122 = scmp.eq.s32.totalorder %s17, 0
    %p123 = por %p121, %p122
    %p124 = scmp.ne.s32.totalorder %s110, %s111
    %p125 = scmp.eq.s32.totalorder %s18, 15
    %p126 = por %p124, %p125
    %p128 = scmp.ne.s32.totalorder %s111, %s127
    %p129 = scmp.eq.s32.totalorder %s18, 0
    %p130 = por %p128, %p129
    %s131 = ssub.s32 %s20, %s27
    %p132 = scmp.eq.s32.totalorder %s131, 0
    %s134 = sadd.s32 %s133, 1
    %s135 = scalar_select %p132, %s133, %s134
    %p138 = pneg %p132
    %p139 = scmp.eq.s32.totalorder %s12, 15
    %p140 = por %p138, %p139
    %p141 = scmp.ne.s32.totalorder %s133, %s136
    %p142 = scmp.eq.s32.totalorder %s12, 0
    %p143 = por %p141, %p142
    %p144 = scmp.ne.s32.totalorder %s133, %s136
    %p145 = scmp.eq.s32.totalorder %s17, 15
    %p146 = por %p144, %p145
    %p147 = scmp.ne.s32.totalorder %s136, %s137
    %p148 = scmp.eq.s32.totalorder %s17, 0
    %p149 = por %p147, %p148
    %p150 = scmp.ne.s32.totalorder %s136, %s137
    %p151 = scmp.eq.s32.totalorder %s18, 15
    %p152 = por %p150, %p151
    %p154 = scmp.ne.s32.totalorder %s137, %s153
    %p155 = scmp.eq.s32.totalorder %s18, 0
    %p156 = por %p154, %p155
    %s157 = ssub.s32 %s19, %s31
    %p158 = scmp.eq.s32.totalorder %s157, 0
    %s160 = sadd.s32 %s159, 1
    %s161 = scalar_select %p158, %s159, %s160
    %p164 = pneg %p158
    %p165 = scmp.eq.s32.totalorder %s12, 15
    %p166 = por %p164, %p165
    %p167 = scmp.ne.s32.totalorder %s159, %s162
    %p168 = scmp.eq.s32.totalorder %s12, 0
    %p169 = por %p167, %p168
    %p170 = scmp.ne.s32.totalorder %s159, %s162
    %p171 = scmp.eq.s32.totalorder %s17, 15
    %p172 = por %p170, %p171
    %p173 = scmp.ne.s32.totalorder %s162, %s163
    %p174 = scmp.eq.s32.totalorder %s17, 0
    %p175 = por %p173, %p174
    %p176 = scmp.ne.s32.totalorder %s162, %s163
    %p177 = scmp.eq.s32.totalorder %s18, 15
    %p178 = por %p176, %p177
    %p180 = scmp.ne.s32.totalorder %s163, %s179
    %p181 = scmp.eq.s32.totalorder %s18, 0
    %p182 = por %p180, %p181
    %p183 = scmp.le.s32.totalorder 1, %s12
    %p184 = scmp.lt.s32.totalorder %s12, 17
    %p185 = pnand %p183, %p184
    %p186 = pneg %p185
    // Predicated region
    $region9: #{learnable_ntxent_loss.1} parent=5 // pred_check
      _
    $region10: #{learnable_ntxent_loss.1} parent=5 // pred_check_branch
      %188 = sbr.rel (%p185) target = $region12
    $region11: #{learnable_ntxent_loss.1} parent=5 // pred_region
      %s189 = ssub.s32 %s12, 1
      // Predicated region
      $region13: #{learnable_ntxent_loss.1} parent=11 // pred_check
        %p190 = pneg %p45
      $region14: #{learnable_ntxent_loss.1} parent=11 // pred_check_branch
        %192 = sbr.rel (%p190) target = $region16
      $region15: #{learnable_ntxent_loss.1} parent=11 // pred_region
        _
      $region16: #{learnable_ntxent_loss.1} parent=11 // pred_fallthru
        _
    $region12: #{learnable_ntxent_loss.1} parent=5 // pred_fallthru
      _
    %p193 = scmp.lt.s32.totalorder %s12, 16
    // Predicated region
    $region17: #{learnable_ntxent_loss.1} parent=5 // pred_check
      %p194 = pneg %p193
    $region18: #{learnable_ntxent_loss.1} parent=5 // pred_check_branch
      %196 = sbr.rel (%p194) target = $region20
    $region19: #{learnable_ntxent_loss.1} parent=5 // pred_region
      // Predicated region
      $region21: #{learnable_ntxent_loss.1} parent=19 // pred_check
        %p197 = pneg %p65
      $region22: #{learnable_ntxent_loss.1} parent=19 // pred_check_branch
        %199 = sbr.rel (%p197) target = $region24
      $region23: #{learnable_ntxent_loss.1} parent=19 // pred_region
        %p200 = scmp.lt.s32.totalorder %s19, 3
        %s201 = scalar_select %p200, %s19, 3
        %s202 = smul.addr %s201, 4
        %s203 = scalar_lea.vmem %s1, %s202
      $region24: #{learnable_ntxent_loss.1} parent=19 // pred_fallthru
        _
      // Predicated region
      $region25: #{learnable_ntxent_loss.1} parent=19 // pred_check
        %p204 = pneg %p91
      $region26: #{learnable_ntxent_loss.1} parent=19 // pred_check_branch
        %206 = sbr.rel (%p204) target = $region28
      $region27: #{learnable_ntxent_loss.1} parent=19 // pred_region
        %p207 = scmp.lt.s32.totalorder %s19, 3
        %s208 = scalar_select %p207, %s19, 3
        %s209 = smul.addr %s208, 4
        %s210 = scalar_lea.vmem %s2, %s209
      $region28: #{learnable_ntxent_loss.1} parent=19 // pred_fallthru
        _
      // Predicated region
      $region29: #{learnable_ntxent_loss.1} parent=19 // pred_check
        %p211 = pneg %p117
      $region30: #{learnable_ntxent_loss.1} parent=19 // pred_check_branch
        %213 = sbr.rel (%p211) target = $region32
      $region31: #{learnable_ntxent_loss.1} parent=19 // pred_region
        %p214 = scmp.lt.s32.totalorder %s20, 3
        %s215 = scalar_select %p214, %s20, 3
        %s216 = smul.addr %s215, 4
        %s217 = scalar_lea.vmem %s3, %s216
      $region32: #{learnable_ntxent_loss.1} parent=19 // pred_fallthru
        _
      // Predicated region
      $region33: #{learnable_ntxent_loss.1} parent=19 // pred_check
        %p218 = pneg %p143
      $region34: #{learnable_ntxent_loss.1} parent=19 // pred_check_branch
        %220 = sbr.rel (%p218) target = $region36
      $region35: #{learnable_ntxent_loss.1} parent=19 // pred_region
        %p221 = scmp.lt.s32.totalorder %s20, 3
        %s222 = scalar_select %p221, %s20, 3
        %s223 = smul.addr %s222, 4
        %s224 = scalar_lea.vmem %s4, %s223
      $region36: #{learnable_ntxent_loss.1} parent=19 // pred_fallthru
        _
    $region20: #{learnable_ntxent_loss.1} parent=5 // pred_fallthru
      _
    %p225 = scmp.le.s32.totalorder 1, %s12
    %p226 = scmp.lt.s32.totalorder %s12, 17
    %p227 = pnand %p225, %p226
    %p228 = pneg %p227
    // Predicated region
    $region37: #{learnable_ntxent_loss.1} parent=5 // pred_check
      _
    $region38: #{learnable_ntxent_loss.1} parent=5 // pred_check_branch
      %230 = sbr.rel (%p227) target = $region40
    $region39: #{learnable_ntxent_loss.1} parent=5 // pred_region
      %s231 = ssub.s32 %s12, 1
      %p232 = pneg %p45
      %p233 = pneg %p42
      %p234 = scmp.lt.s32.totalorder %s21, 3
      %s235 = scalar_select %p234, %s21, 3
      %s236 = smul.addr %s235, 4
      %s237 = scalar_lea.vmem %s1, %s236
      %p238 = pneg %p71
      %p239 = pneg %p68
      %p240 = scmp.lt.s32.totalorder %s21, 3
      %s241 = scalar_select %p240, %s21, 3
      %s242 = smul.addr %s241, 4
      %s243 = scalar_lea.vmem %s2, %s242
      %p244 = pneg %p97
      %p245 = pneg %p94
      %p246 = scmp.lt.s32.totalorder %s22, 3
      %s247 = scalar_select %p246, %s22, 3
      %s248 = smul.addr %s247, 4
      %s249 = scalar_lea.vmem %s3, %s248
      %p250 = pneg %p123
      %p251 = pneg %p120
      %p252 = scmp.lt.s32.totalorder %s22, 3
      %s253 = scalar_select %p252, %s22, 3
      %s254 = smul.addr %s253, 4
      %s255 = scalar_lea.vmem %s4, %s254
      %p256 = pneg %p149
      %p257 = pneg %p146
      %p258 = pneg %p175
      %p259 = pneg %p172
      %p260 = scmp.lt.s32.totalorder %s21, 3
      %s261 = scalar_select %p260, %s21, 3
      %s262 = smul.addr %s261, 8
      %s263 = scalar_lea.vmem %s5, %s262
      %p264 = scmp.lt.s32.totalorder %s21, 3
      %s265 = scalar_select %p264, %s21, 3
      %s266 = smul.addr %s265, 4
      %s267 = scalar_lea.vmem %s1, %s266
      %p268 = scmp.lt.s32.totalorder %s21, 3
      %s269 = scalar_select %p268, %s21, 3
      %s270 = smul.addr %s269, 4
      %s271 = scalar_lea.vmem %s2, %s270
      %p272 = scmp.lt.s32.totalorder %s22, 3
      %s273 = scalar_select %p272, %s22, 3
      %s274 = smul.addr %s273, 4
      %s275 = scalar_lea.vmem %s3, %s274
      %p276 = scmp.lt.s32.totalorder %s22, 3
      %s277 = scalar_select %p276, %s22, 3
      %s278 = smul.addr %s277, 4
      %s279 = scalar_lea.vmem %s4, %s278
      %p280 = scmp.lt.s32.totalorder %s21, 3
      %s281 = scalar_select %p280, %s21, 3
      %s282 = smul.addr %s281, 8
      %s283 = scalar_lea.vmem %s5, %s282
      %s285 = sld [smem:[#allocation6]]
      %s286 = smax.f32 %s285, 0.0
      %s287 = smin.f32 %s286, 4.6051
      %v288 = vstv %s287
      %v289 = vmul.f32 %v288, 1.442695
      %v290 = vpow.pop %v289
      %s291 = vtos %v290
      %p292 = scmp.eq.s32.totalorder %s22, 0
      // Predicated region
      $region41: #{learnable_ntxent_loss.1} parent=39 // pred_check
        %p293 = pneg %p292
      $region42: #{learnable_ntxent_loss.1} parent=39 // pred_check_branch
        %295 = sbr.rel (%p293) target = $region44
      $region43: #{learnable_ntxent_loss.1} parent=39 // pred_region
        %vm296 = vcmask 7168
        %297 = vst.msk [vmem:[#allocation2] sm:$0xff] %vm296, -inf
        %298 = vst.msk [vmem:[#allocation3] sm:$0xff] %vm296, 0.0
        %299 = vst.msk [vmem:[#allocation4] sm:$0xff] %vm296, -inf
        %300 = vst.msk [vmem:[#allocation5] sm:$0xff] %vm296, 0.0
      $region44: #{learnable_ntxent_loss.1} parent=39 // pred_fallthru
        _
      %v301 = vld [vmem:[%s267] sm:$0xf]
      %v302 = vld [vmem:[%s279] sm:$0xf]
      %303 = vmatprep.subr.bf16.mxu0 0
      %304 = vmatpush1.bf16.xpose.msra.mxu0 0
      %305 = vmatprep.subr.bf16.mxu0 0
      %306 = vmatpush1.bf16.xpose.msra.mxu0 0
      %307 = vmatprep.subr.bf16.mxu0 0
      %308 = vmatpush1.bf16.xpose.msra.mxu0 0
      %309 = vmatprep.subr.bf16.mxu0 0
      %310 = vmatpush1.bf16.xpose.msra.mxu0 0
      %311 = vmatprep.subr.bf16.mxu0 0
      %312 = vmatpush1.bf16.xpose.msra.mxu0 0
      %313 = vmatprep.subr.bf16.mxu0 0
      %314 = vmatpush1.bf16.xpose.msra.mxu0 0
      %315 = vmatprep.subr.bf16.mxu0 0
      %316 = vmatpush1.bf16.xpose.msra.mxu0 0
      %317 = vmatprep.subr.bf16.mxu0 0
      %318 = vmatpush1.bf16.xpose.msra.mxu0 %v302
      %319 = vmatprep.subr.bf16.mxu0 0
      %320 = vmatpush2.bf16.xpose.msra.mxu0 0
      %321 = vmatprep.subr.bf16.mxu0 0
      %322 = vmatpush2.bf16.xpose.msra.mxu0 0
      %323 = vmatprep.subr.bf16.mxu0 0
      %324 = vmatpush2.bf16.xpose.msra.mxu0 0
      %325 = vmatprep.subr.bf16.mxu0 0
      %326 = vmatpush2.bf16.xpose.msra.mxu0 0
      %327 = vmatprep.subr.bf16.mxu0 0
      %328 = vmatpush2.bf16.xpose.msra.mxu0 0
      %329 = vmatprep.subr.bf16.mxu0 0
      %330 = vmatpush2.bf16.xpose.msra.mxu0 0
      %331 = vmatprep.subr.bf16.mxu0 0
      %332 = vmatpush2.bf16.xpose.msra.mxu0 0
      %333 = vmatprep.subr.bf16.mxu0 0
      %334 = vmatpush2.bf16.xpose.msra.mxu0 0
      %335 = vmatprep.mubr.bf16.mxu0 0
      %336 = vmatmul.mubr.bf16.gmra.mxu0 %v301
      %v337 = vpop.f32.mrf.mxu0
      %v338 = vadd.f32 0.0, %v337
      %v339 = vpop.f32.mrf.mxu0
      %v340 = vpop.f32.mrf.mxu0
      %v341 = vpop.f32.mrf.mxu0
      %342 = vdwg.mxu0
      %v343 = vstv %s291
      %v344 = vmul.f32 %v338, %v343
      %v345 = vld [vmem:[%s271] sm:$0xf]
      %v346 = vld [vmem:[%s275] sm:$0xf]
      %347 = vmatprep.subr.bf16.mxu0 0
      %348 = vmatpush1.bf16.xpose.msra.mxu0 0
      %349 = vmatprep.subr.bf16.mxu0 0
      %350 = vmatpush1.bf16.xpose.msra.mxu0 0
      %351 = vmatprep.subr.bf16.mxu0 0
      %352 = vmatpush1.bf16.xpose.msra.mxu0 0
      %353 = vmatprep.subr.bf16.mxu0 0
      %354 = vmatpush1.bf16.xpose.msra.mxu0 0
      %355 = vmatprep.subr.bf16.mxu0 0
      %356 = vmatpush1.bf16.xpose.msra.mxu0 0
      %357 = vmatprep.subr.bf16.mxu0 0
      %358 = vmatpush1.bf16.xpose.msra.mxu0 0
      %359 = vmatprep.subr.bf16.mxu0 0
      %360 = vmatpush1.bf16.xpose.msra.mxu0 0
      %361 = vmatprep.subr.bf16.mxu0 0
      %362 = vmatpush1.bf16.xpose.msra.mxu0 %v346
      %363 = vmatprep.subr.bf16.mxu0 0
      %364 = vmatpush2.bf16.xpose.msra.mxu0 0
      %365 = vmatprep.subr.bf16.mxu0 0
      %366 = vmatpush2.bf16.xpose.msra.mxu0 0
      %367 = vmatprep.subr.bf16.mxu0 0
      %368 = vmatpush2.bf16.xpose.msra.mxu0 0
      %369 = vmatprep.subr.bf16.mxu0 0
      %370 = vmatpush2.bf16.xpose.msra.mxu0 0
      %371 = vmatprep.subr.bf16.mxu0 0
      %372 = vmatpush2.bf16.xpose.msra.mxu0 0
      %373 = vmatprep.subr.bf16.mxu0 0
      %374 = vmatpush2.bf16.xpose.msra.mxu0 0
      %375 = vmatprep.subr.bf16.mxu0 0
      %376 = vmatpush2.bf16.xpose.msra.mxu0 0
      %377 = vmatprep.subr.bf16.mxu0 0
      %378 = vmatpush2.bf16.xpose.msra.mxu0 0
      %379 = vmatprep.mubr.bf16.mxu0 0
      %380 = vmatmul.mubr.bf16.gmra.mxu0 %v345
      %v381 = vpop.f32.mrf.mxu0
      %v382 = vadd.f32 0.0, %v381
      %v383 = vpop.f32.mrf.mxu0
      %v384 = vpop.f32.mrf.mxu0
      %v385 = vpop.f32.mrf.mxu0
      %386 = vdwg.mxu0
      %v387 = vmul.f32 %v382, %v343
      %v388 = vld [vmem:[#allocation2] sm:$0xff]
      %vm389 = vcmask 64512
      %v390 = vsel %vm389, %v344, -inf
      %391 = vmax.xlane.f32.xlu0 %v390
      %v392 = vpop.xlane.xlu0 %391
      %v393 = vmax.f32 %v388, %v392
      %v394 = vsub.f32 %v388, %v393
      %v395 = vmul.f32 %v394, 1.442695
      %v396 = vpow.pop %v395
      %v397 = vld [vmem:[#allocation3] sm:$0xff]
      %v398 = vmul.f32 %v396, %v397
      %400 = vset.pattern.permute.xlu0 0
      %401 = vperm.xlu0 %400, %v393
      %v402 = vpop.permute.xlu0 %401
      %v404 = vsub.f32 %v344, %v402
      %v405 = vmul.f32 %v404, 1.442695
      %v406 = vpow.pop %v405
      %v407 = vsel %vm389, %v406, 0.0
      %408 = vadd.xlane.f32.xlu0 %v407
      %v409 = vpop.xlane.xlu0 %408
      %v410 = vadd.f32 %v398, %v409
      %vm411 = vcmask 7168
      %412 = vst.msk [vmem:[#allocation3] sm:$0xff] %vm411, %v410
      %413 = vst.msk [vmem:[#allocation2] sm:$0xff] %vm411, %v393
      %v414 = vld [vmem:[#allocation4] sm:$0xff]
      %v415 = vsel %vm389, %v387, -inf
      %416 = vmax.xlane.f32.xlu0 %v415
      %v417 = vpop.xlane.xlu0 %416
      %v418 = vmax.f32 %v414, %v417
      %v419 = vsub.f32 %v414, %v418
      %v420 = vmul.f32 %v419, 1.442695
      %v421 = vpow.pop %v420
      %v422 = vld [vmem:[#allocation5] sm:$0xff]
      %v423 = vmul.f32 %v421, %v422
      %425 = vset.pattern.permute.xlu0 0
      %426 = vperm.xlu0 %425, %v418
      %v427 = vpop.permute.xlu0 %426
      %v429 = vsub.f32 %v387, %v427
      %v430 = vmul.f32 %v429, 1.442695
      %v431 = vpow.pop %v430
      %v432 = vsel %vm389, %v431, 0.0
      %433 = vadd.xlane.f32.xlu0 %v432
      %v434 = vpop.xlane.xlu0 %433
      %v435 = vadd.f32 %v423, %v434
      %436 = vst.msk [vmem:[#allocation5] sm:$0xff] %vm411, %v435
      %437 = vst.msk [vmem:[#allocation4] sm:$0xff] %vm411, %v418
      %p438 = scmp.eq.s32.totalorder %s22, 3
      // Predicated region
      $region45: #{learnable_ntxent_loss.1} parent=39 // pred_check
        %p439 = pneg %p438
      $region46: #{learnable_ntxent_loss.1} parent=39 // pred_check_branch
        %441 = sbr.rel (%p439) target = $region48
      $region47: #{learnable_ntxent_loss.1} parent=39 // pred_region
        %v442 = vld [vmem:[#allocation2] sm:$0xff]
        %v443 = vld [vmem:[#allocation3] sm:$0xff]
        %v444 = vlog2.pop %v443
        %v445 = vmul.f32 %v444, 0.6931472
        %v446 = vadd.f32 %v442, %v445
        %v447 = vld [vmem:[#allocation4] sm:$0xff]
        %v448 = vld [vmem:[#allocation5] sm:$0xff]
        %v449 = vlog2.pop %v448
        %v450 = vmul.f32 %v449, 0.6931472
        %v451 = vadd.f32 %v447, %v450
        %v452 = vld [vmem:[%s267] sm:$0xf]
        %v453 = vunpack.c.l.bf16 %v452
        %v454 = vld [vmem:[%s271] sm:$0xf]
        %v455 = vunpack.c.l.bf16 %v454
        %v456 = vmul.f32 %v453, %v455
        %457 = vadd.xlane.f32.xlu0 %v456
        %v458 = vpop.xlane.xlu0 %457
        %v459 = vmul.f32 %v343, %v458
        %v460 = vadd.f32 %v446, %v451
        %v461 = vmul.f32 %v459, 2.0
        %v462 = vsub.f32 %v460, %v461
        %v463 = vsel %vm411, %v462, 0.0
        %464 = vadd.xlane.f32.xlu0 %v463
        %v465 = vpop.xlane.xlu0 %464
        %v466 = vrot.slane %v465, 4
        %v467 = vadd.f32 %v465, %v466
        %v468 = vrot.slane %v467, 2
        %v469 = vadd.f32 %v467, %v468
        %v470 = vrot.slane %v469, 1
        %v471 = vadd.f32 %v469, %v470
        %s472 = vtos %v471
        %v473 = vstv %s472
        %474 = vst [vmem:[%s283] sm:$0xff] %v473
      $region48: #{learnable_ntxent_loss.1} parent=39 // pred_fallthru
        _
      %p475 = scmp.lt.s32.totalorder %s21, 3
      %s476 = scalar_select %p475, %s21, 3
      %s477 = smul.addr %s476, 8
      %s478 = scalar_lea.vmem %s5, %s477
      // Predicated region
      $region49: #{learnable_ntxent_loss.1} parent=39 // pred_check
        %p479 = pneg %p172
      $region50: #{learnable_ntxent_loss.1} parent=39 // pred_check_branch
        %481 = sbr.rel (%p479) target = $region52
      $region51: #{learnable_ntxent_loss.1} parent=39 // pred_region
        _
      $region52: #{learnable_ntxent_loss.1} parent=39 // pred_fallthru
        _
    $region40: #{learnable_ntxent_loss.1} parent=5 // pred_fallthru
      _
    %p482 = scmp.le.s32.totalorder 2, %s12
    // Predicated region
    $region53: #{learnable_ntxent_loss.1} parent=5 // pred_check
      %p483 = pneg %p482
    $region54: #{learnable_ntxent_loss.1} parent=5 // pred_check_branch
      %485 = sbr.rel (%p483) target = $region56
    $region55: #{learnable_ntxent_loss.1} parent=5 // pred_region
      %s486 = ssub.s32 %s12, 2
      // Predicated region
      $region57: #{learnable_ntxent_loss.1} parent=55 // pred_check
        %p487 = pneg %p178
      $region58: #{learnable_ntxent_loss.1} parent=55 // pred_check_branch
        %489 = sbr.rel (%p487) target = $region60
      $region59: #{learnable_ntxent_loss.1} parent=55 // pred_region
        %p490 = scmp.lt.s32.totalorder %s23, 3
        %s491 = scalar_select %p490, %s23, 3
        %s492 = smul.addr %s491, 8
        %s493 = scalar_lea.vmem %s5, %s492
      $region60: #{learnable_ntxent_loss.1} parent=55 // pred_fallthru
        _
    $region56: #{learnable_ntxent_loss.1} parent=5 // pred_fallthru
      _
  $region6: #{learnable_ntxent_loss.1} parent=0 // loop_footer
    %s16 = sadd.s32 1, %s12
  $region7: #{learnable_ntxent_loss.1} parent=0 // loop_footer_branch
    %11 = sbr.rel target = $region3
  $region8: #{learnable_ntxent_loss.1} parent=0 // loop_exit
    _

</llo_original>
